<compile_context>
chip_gen: v6e
topology: v6e:2x2x1
jax: 0.10.0
libtpu: 0.0.40
codegen_flags: <defaults>
</compile_context>

<pallas_src>
from typing import List, Optional, Set

import jax
import jax.numpy as jnp
from jax.experimental import pallas as pl
from jax.experimental.pallas import tpu as pltpu


def _round_up(x: int, m: int) -> int:
    return ((x + m - 1) // m) * m


def _cdiv(a: int, b: int) -> int:
    return -(-a // b)


def _make_kernel(n_layers: int):
    """Pallas kernel for an MLP with `n_layers` Linear layers, batch on lanes.

    refs = (inp_T, w_0..w_{L-2}, w_last, b_0..b_{L-1}, out)
      inp_T : [D_in, TB]                   batch tile on the lane axis
      w_i   : [d_out_i, d_in_i]            hidden layers (MXU: W @ h)
      w_last: [d_in_last, 1]               final layer, lane-broadcast column
      b_i   : [d_out_i, 1]
      out   : [1, TB]                      sigmoid(logits), lane-dense
    """

    def kernel(*refs):
        inp_ref = refs[0]
        w_refs = refs[1:1 + n_layers]
        b_refs = refs[1 + n_layers:1 + 2 * n_layers]
        out_ref = refs[-1]

        h = inp_ref[...]                                        # [D_in, TB] f32
        for li in range(n_layers - 1):                          # hidden layers
            h = jnp.dot(w_refs[li][...], h,
                        preferred_element_type=jnp.float32)     # [d_out, TB]
            h = jnp.maximum(h + b_refs[li][...], 0.0)           # bias + ReLU
        # Final Linear(d_last, 1): multiply + sublane reduce on VPU/XLU
        # (skip the MXU for an N=1 matmul).
        logits = (jnp.sum(h * w_refs[-1][...], axis=0, keepdims=True)
                  + b_refs[-1][...])                             # [1, TB]
        # sigmoid: exp on the EUP, divide via the reciprocal path.
        out_ref[...] = pl.reciprocal(1.0 + jnp.exp(-logits), approx=False)

    return kernel


class AdversaryPallas:
    """JAX/Pallas port of the PyTorch `Adversary` module."""

    def __init__(self,
                 input_shape: int,
                 hidden_units: List[int] = [],
                 adv_input: Set[str] = {'X', 'Y'},
                 num_groups: Optional[int] = None,
                 key: jax.Array = None):
        if len(adv_input) == 0:
            raise ValueError('Adversary has no inputs!')
        num_inputs = 0
        if 'X' in adv_input:
            num_inputs += input_shape
        if 'Y' in adv_input:
            num_inputs += 1
        if 'S' in adv_input:
            assert num_groups is not None, \
                'num_groups must be set when using protected features as input'
            num_inputs += num_groups
        self.adv_input = set(adv_input)
        self.num_groups = num_groups

        dims = [num_inputs] + list(hidden_units) + [1]
        self.dims = dims
        self.n_layers = len(dims) - 1

        # Deterministic init (mimics nn.Linear's U(-1/sqrt(fan_in), +1/sqrt(fan_in))).
        if key is None:
            key = jax.random.PRNGKey(0)
        self.weights = []   # torch layout [d_out, d_in]
        self.biases = []    # [d_out, 1]
        for d_in, d_out in zip(dims[:-1], dims[1:]):
            key, kw, kb = jax.random.split(key, 3)
            bound = 1.0 / (d_in ** 0.5)
            self.weights.append(
                jax.random.uniform(kw, (d_out, d_in), jnp.float32, -bound, bound))
            self.biases.append(
                jax.random.uniform(kb, (d_out, 1), jnp.float32, -bound, bound))

        self._fwd = jax.jit(self._forward)

    # ----- input assembly -------------------------------------------------

    def _build_input_t(self, x, y, s, b_pad: int):
        """Build the batch-on-lanes input [D_in, b_pad] directly.

        Parts are generated already transposed (x.T, y[None, :],
        one_hot(s, axis=0)) so XLA fuses concat+pad into a single producer
        instead of the previous concat -> transpose -> pad HBM round-trips.
        """
        batch = x.shape[0]
        parts_t = []
        if 'X' in self.adv_input:
            parts_t.append(jnp.transpose(x.astype(jnp.float32)))          # [F, B]
        if 'Y' in self.adv_input:
            parts_t.append(y.astype(jnp.float32)[None, :])                # [1, B]
        if 'S' in self.adv_input:
            parts_t.append(jax.nn.one_hot(s.astype(jnp.int32),
                                          self.num_groups,
                                          dtype=jnp.float32, axis=0))     # [G, B]
        inp_t = jnp.concatenate(parts_t, axis=0)                          # [D_in, B]
        # TODO(synk): assemble the parts directly inside the kernel (separate
        # BlockSpecs + broadcasted_iota one-hot) to remove even this single
        # producer pass; kept in the jitted wrapper for lowering robustness.
        return jnp.pad(inp_t, ((0, 0), (0, b_pad - batch)))               # [D_in, b_pad]

    # ----- tile sizing ----------------------------------------------------

    def _tile_plan(self, batch: int, d_in: int):
        """Pick (tb, n_tiles, b_pad): lane-dense tiles, VMEM-aware, >=2 tiles
        for v7x dual-TC when the batch permits, bounded padding waste."""
        hidden_sum = sum(self.dims[1:-1])
        # f32 bytes per lane of a batch tile: double-buffered input column
        # (2*d_in), compiler-materialized intermediates (~2*sum(hidden)),
        # double-buffered output (2*1), small slack.
        per_lane_bytes = 4 * (2 * d_in + 2 * hidden_sum + 2 + 2)
        vmem_budget = 24 * 1024 * 1024     # headroom under v7x's 32 MiB scoped default
        cap = min(4096, max(128, (vmem_budget // per_lane_bytes) // 128 * 128))

        b_pad128 = _round_up(batch, 128)
        # Span both TensorCores on v7x whenever there is >1 lane-tile of work.
        n_tiles_min = 2 if b_pad128 >= 256 else 1
        n_tiles = max(n_tiles_min, _cdiv(b_pad128, cap))
        tb = _round_up(_cdiv(b_pad128, n_tiles), 128)   # <= cap by construction
        b_pad = n_tiles * tb
        return tb, n_tiles, b_pad

    # ----- forward ----------------------------------------------------------

    def _forward(self, x, y, s):
        batch = x.shape[0]
        d_in = self.dims[0]

        tb, n_tiles, b_pad = self._tile_plan(batch, d_in)
        inp_t = self._build_input_t(x, y, s, b_pad)       # [D_in, b_pad] f32

        # Hidden weights in [d_out, d_in]; final weight as a [d_in, 1] column.
        w_args = list(self.weights[:-1]) + [self.weights[-1].T]
        b_args = list(self.biases)

        in_specs = [pl.BlockSpec((d_in, tb), lambda i: (0, i))]
        in_specs += [pl.BlockSpec(w.shape, lambda i: (0, 0)) for w in w_args]
        in_specs += [pl.BlockSpec(b.shape, lambda i: (0, 0)) for b in b_args]

        flops = 2 * b_pad * sum(di * do for di, do
                                in zip(self.dims[:-1], self.dims[1:]))
        bytes_accessed = 4 * (inp_t.size
                              + sum(w.size for w in w_args)
                              + sum(b.size for b in b_args)
                              + b_pad)

        adv_pad = pl.pallas_call(
            _make_kernel(self.n_layers),
            out_shape=jax.ShapeDtypeStruct((1, b_pad), jnp.float32),
            grid=(n_tiles,),
            in_specs=in_specs,
            out_specs=pl.BlockSpec((1, tb), lambda i: (0, i)),
            compiler_params=pltpu.CompilerParams(
                dimension_semantics=("parallel",),
                vmem_limit_bytes=32 * 1024 * 1024),
            cost_estimate=pl.CostEstimate(flops=int(flops),
                                          transcendentals=int(b_pad),
                                          bytes_accessed=int(bytes_accessed)),
        )(inp_t, *w_args, *b_args)

        # Global normalization epilogue, hoisted out of the kernel so batch
        # tiles stay independent ("parallel" grid axis stays valid).
        adv = adv_pad[0, :batch]                          # [B]
        adv_norm = adv / jnp.sum(adv)
        return batch * adv_norm + 1.0                     # [B]

    def __call__(self, x, y, s):
        return self._fwd(x, y, s)


def _reference_forward(model: AdversaryPallas, x, y, s):
    """Pure-JAX reference (mirrors the PyTorch module) for correctness check."""
    parts = []
    if 'X' in model.adv_input:
        parts.append(x.astype(jnp.float32))
    if 'Y' in model.adv_input:
        parts.append(y.astype(jnp.float32)[:, None])
    if 'S' in model.adv_input:
        parts.append(jax.nn.one_hot(s.astype(jnp.int32),
                                    model.num_groups, dtype=jnp.float32))
    h = jnp.concatenate(parts, axis=1)
    for li in range(model.n_layers):
        h = h @ model.weights[li].T + model.biases[li][:, 0]
        if li < model.n_layers - 1:
            h = jnp.maximum(h, 0.0)
    adv = jax.nn.sigmoid(h)
    adv_norm = adv / jnp.sum(adv)
    out = x.shape[0] * adv_norm + jnp.ones_like(adv_norm)
    return jnp.squeeze(out, axis=-1)


if __name__ == "__main__":
    key = jax.random.PRNGKey(0)
    k_x, k_y, k_s, k_params = jax.random.split(key, 4)

    batch = 8
    input_shape = 4
    hidden_units = [32, 16]
    num_groups = 3

    x = jax.random.normal(k_x, (batch, input_shape), jnp.float32)
    y = (jax.random.uniform(k_y, (batch,)) > 0.5).astype(jnp.float32)
    s = jax.random.randint(k_s, (batch,), 0, num_groups)

    model = AdversaryPallas(input_shape=input_shape,
                            hidden_units=hidden_units,
                            adv_input={'X', 'Y', 'S'},
                            num_groups=num_groups,
                            key=k_params)

    out = model(x, y, s)
    out = jax.block_until_ready(out)

    ref = _reference_forward(model, x, y, s)
    assert out.shape == (batch,), out.shape
    assert jnp.allclose(out, ref, atol=1e-5, rtol=1e-5), (out, ref)

    # Exercise a multi-tile batch (>=2 tiles -> dual-TC path on v7x).
    batch2 = 640
    x2 = jax.random.normal(k_x, (batch2, input_shape), jnp.float32)
    y2 = (jax.random.uniform(k_y, (batch2,)) > 0.5).astype(jnp.float32)
    s2 = jax.random.randint(k_s, (batch2,), 0, num_groups)
    out2 = jax.block_until_ready(model(x2, y2, s2))
    ref2 = _reference_forward(model, x2, y2, s2)
    assert out2.shape == (batch2,), out2.shape
    assert jnp.allclose(out2, ref2, atol=1e-5, rtol=1e-5)

    print("KERNEL_OK")
</pallas_src>

<mosaic_0001>
module attributes {stable_mosaic.version = 11 : i64} {
  func.func @kernel(%arg0: i32, %arg1: memref<8x128xf32, #tpu.memory_space<vmem>>, %arg2: memref<32x8xf32, #tpu.memory_space<vmem>>, %arg3: memref<16x32xf32, #tpu.memory_space<vmem>>, %arg4: memref<16x1xf32, #tpu.memory_space<vmem>>, %arg5: memref<32x1xf32, #tpu.memory_space<vmem>>, %arg6: memref<16x1xf32, #tpu.memory_space<vmem>>, %arg7: memref<1x1xf32, #tpu.memory_space<vmem>>, %arg8: memref<1x128xf32, #tpu.memory_space<vmem>>) attributes {dimension_semantics = [#tpu.dimension_semantics<parallel>], iteration_bounds = array<i64: 1>, scalar_prefetch = 0 : i64, scratch_operands = 0 : i64, tpu.core_type = #tpu.core_type<tc>, window_params = [{transform_indices = @transform_0, window_bounds = array<i64: 8, 128>}, {pipeline_mode = #tpu.pipeline_mode<synchronous>, transform_indices = @transform_1, window_bounds = array<i64: 32, 8>}, {pipeline_mode = #tpu.pipeline_mode<synchronous>, transform_indices = @transform_2, window_bounds = array<i64: 16, 32>}, {pipeline_mode = #tpu.pipeline_mode<synchronous>, transform_indices = @transform_3, window_bounds = array<i64: 16, 1>}, {pipeline_mode = #tpu.pipeline_mode<synchronous>, transform_indices = @transform_4, window_bounds = array<i64: 32, 1>}, {pipeline_mode = #tpu.pipeline_mode<synchronous>, transform_indices = @transform_5, window_bounds = array<i64: 16, 1>}, {pipeline_mode = #tpu.pipeline_mode<synchronous>, transform_indices = @transform_6, window_bounds = array<i64: 1, 1>}, {transform_indices = @transform_7, window_bounds = array<i64: 1, 128>}]} {
    %c0 = arith.constant 0 : index
    %c0_0 = arith.constant 0 : index
    %0 = vector.load %arg1[%c0, %c0_0] : memref<8x128xf32, #tpu.memory_space<vmem>>, vector<8x128xf32>
    %c0_1 = arith.constant 0 : index
    %c0_2 = arith.constant 0 : index
    %1 = vector.load %arg2[%c0_1, %c0_2] : memref<32x8xf32, #tpu.memory_space<vmem>>, vector<32x8xf32>
    %cst = arith.constant dense<0.000000e+00> : vector<32x128xf32>
    %2 = tpu.matmul %1, %0, %cst {dimension_numbers = #tpu.dot_dimension_numbers<[1], [0], [0], [1], [0, 0, 1, 1], [], []>} : vector<32x8xf32>, vector<8x128xf32>, vector<32x128xf32> -> vector<32x128xf32>
    %c0_3 = arith.constant 0 : index
    %c0_4 = arith.constant 0 : index
    %3 = vector.load %arg5[%c0_3, %c0_4] : memref<32x1xf32, #tpu.memory_space<vmem>>, vector<32x1xf32>
    %4 = vector.broadcast %3 : vector<32x1xf32> to vector<32x128xf32>
    %5 = arith.addf %2, %4 : vector<32x128xf32>
    %cst_5 = arith.constant 0.000000e+00 : f32
    %6 = vector.broadcast %cst_5 : f32 to vector<32x128xf32>
    %7 = arith.maximumf %5, %6 : vector<32x128xf32>
    %c0_6 = arith.constant 0 : index
    %c0_7 = arith.constant 0 : index
    %8 = vector.load %arg3[%c0_6, %c0_7] : memref<16x32xf32, #tpu.memory_space<vmem>>, vector<16x32xf32>
    %cst_8 = arith.constant dense<0.000000e+00> : vector<16x128xf32>
    %9 = tpu.matmul %8, %7, %cst_8 {dimension_numbers = #tpu.dot_dimension_numbers<[1], [0], [0], [1], [0, 0, 1, 1], [], []>} : vector<16x32xf32>, vector<32x128xf32>, vector<16x128xf32> -> vector<16x128xf32>
    %c0_9 = arith.constant 0 : index
    %c0_10 = arith.constant 0 : index
    %10 = vector.load %arg6[%c0_9, %c0_10] : memref<16x1xf32, #tpu.memory_space<vmem>>, vector<16x1xf32>
    %11 = vector.broadcast %10 : vector<16x1xf32> to vector<16x128xf32>
    %12 = arith.addf %9, %11 : vector<16x128xf32>
    %cst_11 = arith.constant 0.000000e+00 : f32
    %13 = vector.broadcast %cst_11 : f32 to vector<16x128xf32>
    %14 = arith.maximumf %12, %13 : vector<16x128xf32>
    %c0_12 = arith.constant 0 : index
    %c0_13 = arith.constant 0 : index
    %15 = vector.load %arg4[%c0_12, %c0_13] : memref<16x1xf32, #tpu.memory_space<vmem>>, vector<16x1xf32>
    %16 = vector.broadcast %15 : vector<16x1xf32> to vector<16x128xf32>
    %17 = arith.mulf %14, %16 : vector<16x128xf32>
    %cst_14 = arith.constant dense<0.000000e+00> : vector<128xf32>
    %18 = vector.multi_reduction <add>, %17, %cst_14 [0] : vector<16x128xf32> to vector<128xf32>
    %19 = vector.shape_cast %18 : vector<128xf32> to vector<1x128xf32>
    %c0_15 = arith.constant 0 : index
    %c0_16 = arith.constant 0 : index
    %20 = vector.load %arg7[%c0_15, %c0_16] : memref<1x1xf32, #tpu.memory_space<vmem>>, vector<1x1xf32>
    %21 = vector.broadcast %20 : vector<1x1xf32> to vector<1x128xf32>
    %22 = arith.addf %19, %21 : vector<1x128xf32>
    %cst_17 = arith.constant 0.000000e+00 : f32
    %23 = vector.broadcast %cst_17 : f32 to vector<1x128xf32>
    %24 = arith.subf %23, %22 : vector<1x128xf32>
    %25 = math.exp %24 : vector<1x128xf32>
    %cst_18 = arith.constant 1.000000e+00 : f32
    %26 = vector.broadcast %cst_18 : f32 to vector<1x128xf32>
    %27 = arith.addf %26, %25 : vector<1x128xf32>
    %28 = tpu.reciprocal %27 : vector<1x128xf32> -> vector<1x128xf32>
    %c0_19 = arith.constant 0 : index
    %c0_20 = arith.constant 0 : index
    %29 = vector.load %arg8[%c0_19, %c0_20] : memref<1x128xf32, #tpu.memory_space<vmem>>, vector<1x128xf32>
    tpu.vector_store %arg8[%c0_19, %c0_20], %28 {strides = array<i32>} : memref<1x128xf32, #tpu.memory_space<vmem>>, vector<1x128xf32>,
    return
  }
  func.func @transform_0(%arg0: i32) -> (i32, i32) {
    %c0_i32 = arith.constant 0 : i32
    %c0_i32_0 = arith.constant 0 : i32
    return %c0_i32, %arg0 : i32, i32
  }
  func.func @transform_1(%arg0: i32) -> (i32, i32) {
    %c0_i32 = arith.constant 0 : i32
    %c0_i32_0 = arith.constant 0 : i32
    %c0_i32_1 = arith.constant 0 : i32
    return %c0_i32, %c0_i32_0 : i32, i32
  }
  func.func @transform_2(%arg0: i32) -> (i32, i32) {
    %c0_i32 = arith.constant 0 : i32
    %c0_i32_0 = arith.constant 0 : i32
    %c0_i32_1 = arith.constant 0 : i32
    return %c0_i32, %c0_i32_0 : i32, i32
  }
  func.func @transform_3(%arg0: i32) -> (i32, i32) {
    %c0_i32 = arith.constant 0 : i32
    %c0_i32_0 = arith.constant 0 : i32
    %c0_i32_1 = arith.constant 0 : i32
    return %c0_i32, %c0_i32_0 : i32, i32
  }
  func.func @transform_4(%arg0: i32) -> (i32, i32) {
    %c0_i32 = arith.constant 0 : i32
    %c0_i32_0 = arith.constant 0 : i32
    %c0_i32_1 = arith.constant 0 : i32
    return %c0_i32, %c0_i32_0 : i32, i32
  }
  func.func @transform_5(%arg0: i32) -> (i32, i32) {
    %c0_i32 = arith.constant 0 : i32
    %c0_i32_0 = arith.constant 0 : i32
    %c0_i32_1 = arith.constant 0 : i32
    return %c0_i32, %c0_i32_0 : i32, i32
  }
  func.func @transform_6(%arg0: i32) -> (i32, i32) {
    %c0_i32 = arith.constant 0 : i32
    %c0_i32_0 = arith.constant 0 : i32
    %c0_i32_1 = arith.constant 0 : i32
    return %c0_i32, %c0_i32_0 : i32, i32
  }
  func.func @transform_7(%arg0: i32) -> (i32, i32) {
    %c0_i32 = arith.constant 0 : i32
    %c0_i32_0 = arith.constant 0 : i32
    return %c0_i32, %arg0 : i32, i32
  }
}

</mosaic_0001>

<llo_original>
// kernel: _forward.1
$region0: #{_forward.1}
  #allocation0 [shape = 'u32[]', space=smem, size = 0x4, offset = 0x4, fixed_abs, tag = 'smem constant byte address 0x4 - core index']
  #allocation1 [shape = 'u32[144,128]{1,0:T(1,128)}', space=vmem, size = 0x12000, scoped, tag = 'internal scratch']
  #allocation2 [shape = 'f32[1,1]{1,0:T(1,128)S(1)}', space=vmem, size = 0x200, scoped, tag = 'scoped memory for _forward.1']
  %s0 = inlined_call_operand.vmem [shape: f32[8,128], index: 0, kind: input, shape index: {}]
  %s1 = inlined_call_operand.hbm [shape: f32[32,8], index: 1, kind: input, shape index: {}]
  %s2 = inlined_call_operand.hbm [shape: f32[16,32], index: 2, kind: input, shape index: {}]
  %s3 = inlined_call_operand.hbm [shape: f32[16,1], index: 3, kind: input, shape index: {}]
  %s4 = inlined_call_operand.vmem [shape: f32[32,1], index: 4, kind: input, shape index: {}]
  %s5 = inlined_call_operand.hbm [shape: f32[16,1], index: 5, kind: input, shape index: {}]
  %s6 = inlined_call_operand.<no memory space> [shape: f32[1,1], index: 6, kind: input, shape index: {}]
  %s7 = inlined_call_operand.vmem [shape: f32[1,128], index: 7, kind: output, shape index: {}]
  %s8 = sld [smem:[#allocation0]]
  $region54: #{_forward.1} parent=0
    _
  %s10 = ssub.s32 1, %s8
  %s11 = scalar_select 0, %s10, %s8
  %v12 = vstv %s6
  %13 = vst [vmem:[#allocation2] sm:$0x1] %v12
  $region1: #{_forward.1} parent=0
    #allocation3 [shape = 'u8[16384]{0}', space=vmem, size = 0x4000, scoped, tag = 'input window, operand 1, single buffered']
    #allocation4 [shape = 's32[1]{0}', space=sflag, size = 0x4, scoped, tag = 'scoped memory for _forward.1']
    #allocation5 [shape = 'u8[8192]{0}', space=vmem, size = 0x2000, scoped, tag = 'input window, operand 2, single buffered']
    #allocation6 [shape = 's32[1]{0}', space=sflag, size = 0x4, scoped, tag = 'scoped memory for _forward.1']
    #allocation7 [shape = 'u8[8192]{0}', space=vmem, size = 0x2000, scoped, tag = 'input window, operand 3, single buffered']
    #allocation8 [shape = 'u8[8192]{0}', space=vmem, size = 0x2000, scoped, tag = 'input window, operand 5, single buffered']
    #allocation9 [shape = 's32[1]{0}', space=sflag, size = 0x4, scoped, tag = 'scoped memory for _forward.1']
    %14 = vsyncpa [#allocation4], 0
    %15 = vsyncpa [#allocation6], 0
    %16 = vsyncpa [#allocation9], 0
    // Predicated region
    $region2: #{_forward.1} parent=1 // pred_check
      _
    $region3: #{_forward.1} parent=1 // pred_check_branch
      %18 = sbr.rel (0) target = $region5
    $region4: #{_forward.1} parent=1 // pred_region
      _
    $region5: #{_forward.1} parent=1 // pred_fallthru
      _
    // Predicated region
    $region6: #{_forward.1} parent=1 // pred_check
      _
    $region7: #{_forward.1} parent=1 // pred_check_branch
      %20 = sbr.rel (0) target = $region9
    $region8: #{_forward.1} parent=1 // pred_region
      %s22 = ssub.s32 512, 512
      %23 = vsyncadd [#allocation4], %s22
      %s24 = sshll.u32 [#allocation3], 4
      %s25 = int_to_ptr.vmem [resolvable:$true] %s24
      %30 = dma.hbm_to_vmem [thread:$0]  %s1, 512, %s25, [#allocation4], 128, 128, 8
    $region9: #{_forward.1} parent=1 // pred_fallthru
      _
    // Predicated region
    $region10: #{_forward.1} parent=1 // pred_check
      _
    $region11: #{_forward.1} parent=1 // pred_check_branch
      %32 = sbr.rel (0) target = $region13
    $region12: #{_forward.1} parent=1 // pred_region
      %s34 = ssub.s32 256, 256
      %35 = vsyncadd [#allocation6], %s34
      %s36 = sshll.u32 [#allocation5], 4
      %s37 = int_to_ptr.vmem [resolvable:$true] %s36
      %42 = dma.hbm_to_vmem [thread:$0]  %s2, 256, %s37, [#allocation6], 128, 128, 8
    $region13: #{_forward.1} parent=1 // pred_fallthru
      _
    // Predicated region
    $region14: #{_forward.1} parent=1 // pred_check
      _
    $region15: #{_forward.1} parent=1 // pred_check_branch
      %44 = sbr.rel (0) target = $region17
    $region16: #{_forward.1} parent=1 // pred_region
      %s46 = ssub.s32 256, 256
      %47 = vsyncadd [#allocation6], %s46
      %s48 = sshll.u32 [#allocation7], 4
      %s49 = int_to_ptr.vmem [resolvable:$true] %s48
      %54 = dma.hbm_to_vmem [thread:$0]  %s3, 256, %s49, [#allocation6], 128, 128, 8
    $region17: #{_forward.1} parent=1 // pred_fallthru
      _
    // Predicated region
    $region18: #{_forward.1} parent=1 // pred_check
      _
    $region19: #{_forward.1} parent=1 // pred_check_branch
      %56 = sbr.rel (0) target = $region21
    $region20: #{_forward.1} parent=1 // pred_region
      _
    $region21: #{_forward.1} parent=1 // pred_fallthru
      _
    // Predicated region
    $region22: #{_forward.1} parent=1 // pred_check
      _
    $region23: #{_forward.1} parent=1 // pred_check_branch
      %58 = sbr.rel (0) target = $region25
    $region24: #{_forward.1} parent=1 // pred_region
      %s60 = ssub.s32 256, 256
      %61 = vsyncadd [#allocation9], %s60
      %s62 = sshll.u32 [#allocation8], 4
      %s63 = int_to_ptr.vmem [resolvable:$true] %s62
      %68 = dma.hbm_to_vmem [thread:$0]  %s5, 256, %s63, [#allocation9], 128, 128, 8
    $region25: #{_forward.1} parent=1 // pred_fallthru
      _
    // Predicated region
    $region26: #{_forward.1} parent=1 // pred_check
      _
    $region27: #{_forward.1} parent=1 // pred_check_branch
      %70 = sbr.rel (0) target = $region29
    $region28: #{_forward.1} parent=1 // pred_region
      _
    $region29: #{_forward.1} parent=1 // pred_fallthru
      _
    // Predicated region
    $region30: #{_forward.1} parent=1 // pred_check
      _
    $region31: #{_forward.1} parent=1 // pred_check_branch
      %72 = sbr.rel (0) target = $region33
    $region32: #{_forward.1} parent=1 // pred_region
      %73 = dma.done [#allocation4], 512
    $region33: #{_forward.1} parent=1 // pred_fallthru
      _
    // Predicated region
    $region34: #{_forward.1} parent=1 // pred_check
      _
    $region35: #{_forward.1} parent=1 // pred_check_branch
      %75 = sbr.rel (0) target = $region37
    $region36: #{_forward.1} parent=1 // pred_region
      %76 = dma.done [#allocation6], 256
    $region37: #{_forward.1} parent=1 // pred_fallthru
      _
    // Predicated region
    $region38: #{_forward.1} parent=1 // pred_check
      _
    $region39: #{_forward.1} parent=1 // pred_check_branch
      %78 = sbr.rel (0) target = $region41
    $region40: #{_forward.1} parent=1 // pred_region
      %79 = dma.done [#allocation6], 256
    $region41: #{_forward.1} parent=1 // pred_fallthru
      _
    // Predicated region
    $region42: #{_forward.1} parent=1 // pred_check
      _
    $region43: #{_forward.1} parent=1 // pred_check_branch
      %81 = sbr.rel (0) target = $region45
    $region44: #{_forward.1} parent=1 // pred_region
      %82 = dma.done [#allocation9], 256
    $region45: #{_forward.1} parent=1 // pred_fallthru
      _
    %v83 = vld [vmem:[%s0] sm:$0xff]
    %v84 = vld [vmem:[#allocation3] sm:$0xff]
    %v85 = vld [vmem:[#allocation3 + $0x8] sm:$0xff]
    %v86 = vld [vmem:[#allocation3 + $0x10] sm:$0xff]
    %v87 = vld [vmem:[#allocation3 + $0x18] sm:$0xff]
    %v88 = vld [vmem:[%s4] sm:$0xff]
    %v89 = vld [vmem:[%s4 + $0x8] sm:$0xff]
    %v90 = vld [vmem:[%s4 + $0x10] sm:$0xff]
    %v91 = vld [vmem:[%s4 + $0x18] sm:$0xff]
    %93 = vset.pattern.permute.xlu0 0
    %94 = vperm.xlu0 %93, %v88
    %v95 = vpop.permute.xlu0 %94
    %98 = vset.pattern.permute.xlu0 0
    %99 = vperm.xlu0 %98, %v89
    %v100 = vpop.permute.xlu0 %99
    %103 = vset.pattern.permute.xlu0 0
    %104 = vperm.xlu0 %103, %v90
    %v105 = vpop.permute.xlu0 %104
    %108 = vset.pattern.permute.xlu0 0
    %109 = vperm.xlu0 %108, %v91
    %v110 = vpop.permute.xlu0 %109
    %vm112 = vcmask 64512
    %v114 = vsel %vm112, %v84, 0
    %v117 = vsel %vm112, %v85, 0
    %v120 = vsel %vm112, %v86, 0
    %v123 = vsel %vm112, %v87, 0
    %125 = vmatprep.subr.mxu0 0.0
    %126 = vmatpush1.msra.mxu0 0.0
    %127 = vmatprep.subr.mxu0 0.0
    %128 = vmatpush1.msra.mxu0 0.0
    %129 = vmatprep.subr.mxu0 0.0
    %130 = vmatpush1.msra.mxu0 0.0
    %131 = vmatprep.subr.mxu0 0.0
    %132 = vmatpush1.msra.mxu0 0.0
    %133 = vmatprep.subr.mxu0 0.0
    %134 = vmatpush1.msra.mxu0 0.0
    %135 = vmatprep.subr.mxu0 0.0
    %136 = vmatpush1.msra.mxu0 0.0
    %137 = vmatprep.subr.mxu0 0.0
    %138 = vmatpush1.msra.mxu0 0.0
    %139 = vmatprep.subr.mxu0 0.0
    %140 = vmatpush1.msra.mxu0 0.0
    %141 = vmatprep.subr.mxu0 0.0
    %142 = vmatpush1.msra.mxu0 0.0
    %143 = vmatprep.subr.mxu0 0.0
    %144 = vmatpush1.msra.mxu0 0.0
    %145 = vmatprep.subr.mxu0 0.0
    %146 = vmatpush1.msra.mxu0 0.0
    %147 = vmatprep.subr.mxu0 0.0
    %148 = vmatpush1.msra.mxu0 0.0
    %149 = vmatprep.subr.mxu0 0.0
    %150 = vmatpush1.msra.mxu0 0.0
    %151 = vmatprep.subr.mxu0 0.0
    %152 = vmatpush1.msra.mxu0 0.0
    %153 = vmatprep.subr.mxu0 0.0
    %154 = vmatpush1.msra.mxu0 0.0
    %155 = vmatprep.subr.mxu0 0.0
    %156 = vmatpush1.msra.mxu0 %v83
    %157 = vmatprep.subr.mxu0 0.0
    %158 = vmatpush2.msra.mxu0 0.0
    %159 = vmatprep.subr.mxu0 0.0
    %160 = vmatpush2.msra.mxu0 0.0
    %161 = vmatprep.subr.mxu0 0.0
    %162 = vmatpush2.msra.mxu0 0.0
    %163 = vmatprep.subr.mxu0 0.0
    %164 = vmatpush2.msra.mxu0 0.0
    %165 = vmatprep.subr.mxu0 0.0
    %166 = vmatpush2.msra.mxu0 0.0
    %167 = vmatprep.subr.mxu0 0.0
    %168 = vmatpush2.msra.mxu0 0.0
    %169 = vmatprep.subr.mxu0 0.0
    %170 = vmatpush2.msra.mxu0 0.0
    %171 = vmatprep.subr.mxu0 0.0
    %172 = vmatpush2.msra.mxu0 0.0
    %173 = vmatprep.subr.mxu0 0.0
    %174 = vmatpush2.msra.mxu0 0.0
    %175 = vmatprep.subr.mxu0 0.0
    %176 = vmatpush2.msra.mxu0 0.0
    %177 = vmatprep.subr.mxu0 0.0
    %178 = vmatpush2.msra.mxu0 0.0
    %179 = vmatprep.subr.mxu0 0.0
    %180 = vmatpush2.msra.mxu0 0.0
    %181 = vmatprep.subr.mxu0 0.0
    %182 = vmatpush2.msra.mxu0 0.0
    %183 = vmatprep.subr.mxu0 0.0
    %184 = vmatpush2.msra.mxu0 0.0
    %185 = vmatprep.subr.mxu0 0.0
    %186 = vmatpush2.msra.mxu0 0.0
    %187 = vmatprep.subr.mxu0 0.0
    %188 = vmatpush2.msra.mxu0 0.0
    %189 = vmatprep.mubr.f32.mxu0 0.0
    %190 = vmatmul.mubr.f32.gmra.mxu0 %v114
    %v191 = vpop.f32.mrf.mxu0
    %v192 = vadd.f32 %v95, %v191
    %v193 = vpop.f32.mrf.mxu0
    %194 = vmatprep.mubr.f32.mxu0 0.0
    %195 = vmatmul.mubr.f32.gmra.mxu0 %v117
    %v196 = vpop.f32.mrf.mxu0
    %v197 = vadd.f32 %v100, %v196
    %v198 = vpop.f32.mrf.mxu0
    %199 = vmatprep.mubr.f32.mxu0 0.0
    %200 = vmatmul.mubr.f32.gmra.mxu0 %v120
    %v201 = vpop.f32.mrf.mxu0
    %v202 = vadd.f32 %v105, %v201
    %v203 = vpop.f32.mrf.mxu0
    %204 = vmatprep.mubr.f32.mxu0 0.0
    %205 = vmatmul.mubr.f32.gmra.mxu0 %v123
    %v206 = vpop.f32.mrf.mxu0
    %v207 = vadd.f32 %v110, %v206
    %v208 = vpop.f32.mrf.mxu0
    %209 = vdwg.mxu0
    %v210 = vmax.f32 %v192, 0.0
    %v211 = vmax.f32 %v197, 0.0
    %v212 = vmax.f32 %v202, 0.0
    %v213 = vmax.f32 %v207, 0.0
    %v214 = vld [vmem:[#allocation5] sm:$0xff]
    %v215 = vld [vmem:[#allocation5 + $0x8] sm:$0xff]
    %v216 = vld [vmem:[#allocation8] sm:$0xff]
    %v217 = vld [vmem:[#allocation8 + $0x8] sm:$0xff]
    %219 = vset.pattern.permute.xlu0 0
    %220 = vperm.xlu0 %219, %v216
    %v221 = vpop.permute.xlu0 %220
    %224 = vset.pattern.permute.xlu0 0
    %225 = vperm.xlu0 %224, %v217
    %v226 = vpop.permute.xlu0 %225
    %vm228 = vcmask 261120
    %v230 = vsel %vm228, %v214, 0
    %v233 = vsel %vm228, %v215, 0
    %235 = vmatprep.subr.mxu0 0.0
    %236 = vmatpush1.msra.mxu0 0.0
    %237 = vmatprep.subr.mxu0 0.0
    %238 = vmatpush1.msra.mxu0 0.0
    %239 = vmatprep.subr.mxu0 0.0
    %240 = vmatpush1.msra.mxu0 0.0
    %241 = vmatprep.subr.mxu0 0.0
    %242 = vmatpush1.msra.mxu0 0.0
    %243 = vmatprep.subr.mxu0 0.0
    %244 = vmatpush1.msra.mxu0 0.0
    %245 = vmatprep.subr.mxu0 0.0
    %246 = vmatpush1.msra.mxu0 0.0
    %247 = vmatprep.subr.mxu0 0.0
    %248 = vmatpush1.msra.mxu0 0.0
    %249 = vmatprep.subr.mxu0 0.0
    %250 = vmatpush1.msra.mxu0 0.0
    %251 = vmatprep.subr.mxu0 0.0
    %252 = vmatpush1.msra.mxu0 0.0
    %253 = vmatprep.subr.mxu0 0.0
    %254 = vmatpush1.msra.mxu0 0.0
    %255 = vmatprep.subr.mxu0 0.0
    %256 = vmatpush1.msra.mxu0 0.0
    %257 = vmatprep.subr.mxu0 0.0
    %258 = vmatpush1.msra.mxu0 0.0
    %259 = vmatprep.subr.mxu0 0.0
    %260 = vmatpush1.msra.mxu0 %v213
    %261 = vmatprep.subr.mxu0 0.0
    %262 = vmatpush1.msra.mxu0 %v212
    %263 = vmatprep.subr.mxu0 0.0
    %264 = vmatpush1.msra.mxu0 %v211
    %265 = vmatprep.subr.mxu0 0.0
    %266 = vmatpush1.msra.mxu0 %v210
    %267 = vmatprep.subr.mxu0 0.0
    %268 = vmatpush2.msra.mxu0 0.0
    %269 = vmatprep.subr.mxu0 0.0
    %270 = vmatpush2.msra.mxu0 0.0
    %271 = vmatprep.subr.mxu0 0.0
    %272 = vmatpush2.msra.mxu0 0.0
    %273 = vmatprep.subr.mxu0 0.0
    %274 = vmatpush2.msra.mxu0 0.0
    %275 = vmatprep.subr.mxu0 0.0
    %276 = vmatpush2.msra.mxu0 0.0
    %277 = vmatprep.subr.mxu0 0.0
    %278 = vmatpush2.msra.mxu0 0.0
    %279 = vmatprep.subr.mxu0 0.0
    %280 = vmatpush2.msra.mxu0 0.0
    %281 = vmatprep.subr.mxu0 0.0
    %282 = vmatpush2.msra.mxu0 0.0
    %283 = vmatprep.subr.mxu0 0.0
    %284 = vmatpush2.msra.mxu0 0.0
    %285 = vmatprep.subr.mxu0 0.0
    %286 = vmatpush2.msra.mxu0 0.0
    %287 = vmatprep.subr.mxu0 0.0
    %288 = vmatpush2.msra.mxu0 0.0
    %289 = vmatprep.subr.mxu0 0.0
    %290 = vmatpush2.msra.mxu0 0.0
    %291 = vmatprep.subr.mxu0 0.0
    %292 = vmatpush2.msra.mxu0 0.0
    %293 = vmatprep.subr.mxu0 0.0
    %294 = vmatpush2.msra.mxu0 0.0
    %295 = vmatprep.subr.mxu0 0.0
    %296 = vmatpush2.msra.mxu0 0.0
    %297 = vmatprep.subr.mxu0 0.0
    %298 = vmatpush2.msra.mxu0 0.0
    %299 = vmatprep.mubr.f32.mxu0 0.0
    %300 = vmatmul.mubr.f32.gmra.mxu0 %v230
    %v301 = vpop.f32.mrf.mxu0
    %v302 = vadd.f32 %v221, %v301
    %v303 = vpop.f32.mrf.mxu0
    %304 = vmatprep.mubr.f32.mxu0 0.0
    %305 = vmatmul.mubr.f32.gmra.mxu0 %v233
    %v306 = vpop.f32.mrf.mxu0
    %v307 = vadd.f32 %v226, %v306
    %v308 = vpop.f32.mrf.mxu0
    %309 = vdwg.mxu0
    %v310 = vmax.f32 %v302, 0.0
    %v311 = vmax.f32 %v307, 0.0
    %v312 = vld [vmem:[#allocation7] sm:$0xff]
    %v313 = vld [vmem:[#allocation7 + $0x8] sm:$0xff]
    %315 = vset.pattern.permute.xlu0 0
    %316 = vperm.xlu0 %315, %v312
    %v317 = vpop.permute.xlu0 %316
    %320 = vset.pattern.permute.xlu0 0
    %321 = vperm.xlu0 %320, %v313
    %v322 = vpop.permute.xlu0 %321
    %v324 = vmul.f32 %v310, %v317
    %v325 = vmul.f32 %v311, %v322
    %v326 = vadd.f32 %v324, %v325
    %v327 = vrot.slane %v326, 4
    %v328 = vadd.f32 %v326, %v327
    %v329 = vrot.slane %v328, 2
    %v330 = vadd.f32 %v328, %v329
    %v331 = vrot.slane %v330, 1
    %v332 = vadd.f32 %v330, %v331
    %v333 = vld [vmem:[#allocation2] sm:$0x1]
    %335 = vset.pattern.permute.xlu0 0
    %336 = vperm.xlu0 %335, %v333
    %v337 = vpop.permute.xlu0 %336
    %v339 = vlaneseq
    %v340 = vshrl.u32 %v339, 7
    %v341 = vsub.s32 0, %v340
    %v342 = vrot.slane %v337, %v341
    %v343 = vadd.f32 %v332, %v342
    %v344 = vsub.f32 0.0, %v343
    %v345 = vmul.f32 %v344, 1.442695
    %v346 = vpow.pop %v345
    %v347 = vadd.f32 %v346, 1.0
    %v348 = vrcp.pop %v347
    %349 = vst [vmem:[%s7] sm:$0x1] %v348
    // Predicated region
    $region46: #{_forward.1} parent=1 // pred_check
      _
    $region47: #{_forward.1} parent=1 // pred_check_branch
      %351 = sbr.rel (0) target = $region49
    $region48: #{_forward.1} parent=1 // pred_region
      _
    $region49: #{_forward.1} parent=1 // pred_fallthru
      _
    // Predicated region
    $region50: #{_forward.1} parent=1 // pred_check
      _
    $region51: #{_forward.1} parent=1 // pred_check_branch
      %353 = sbr.rel (0) target = $region53
    $region52: #{_forward.1} parent=1 // pred_region
      _
    $region53: #{_forward.1} parent=1 // pred_fallthru
      _
    %354 = vsyncpa [#allocation4], 1
    %355 = vsyncpa [#allocation6], 1
    %356 = vsyncpa [#allocation9], 1

</llo_original>
